<compile_context>
chip_gen: v6e
topology: v6e:2x2x1
jax: 0.10.0
libtpu: 0.0.40
codegen_flags: <defaults>
</compile_context>

<pallas_src>
import math

import jax
import jax.numpy as jnp
from jax.experimental import pallas as pl
from jax.experimental.pallas import tpu as pltpu

MIN_SIGMA = 1e-05

_HAS_INKERNEL_RNG = hasattr(pltpu, "prng_seed") and hasattr(pltpu, "stateful_normal")


# --------------------------------------------------------------------------- #
# Kernels
# --------------------------------------------------------------------------- #
def _varlayer_eval_kernel(x_ref, mean_ref, b_ref, o_ref, acc_ref):
    """Eval mode: w = mean, b = mean_b.  Only one weight stream."""
    k = pl.program_id(2)

    @pl.when(k == 0)
    def _():
        acc_ref[...] = jnp.zeros_like(acc_ref)

    acc_ref[...] += jnp.dot(x_ref[...], mean_ref[...],
                            preferred_element_type=jnp.float32)

    @pl.when(k == pl.num_programs(2) - 1)
    def _():
        # bias add + ReLU only in the finalize; full lane-dense tile store
        o_ref[...] = jnp.maximum(acc_ref[...] + b_ref[...], 0.0).astype(o_ref.dtype)


def _varlayer_train_rng_kernel(seed_ref, x_ref, mean_ref, log_sigma_ref, b_ref,
                               o_ref, acc_ref):
    """Training mode, eps_w drawn in-kernel from the TPU hardware PRNG."""
    j = pl.program_id(1)
    k = pl.program_id(2)

    @pl.when(k == 0)
    def _():
        acc_ref[...] = jnp.zeros_like(acc_ref)

    # Seed keyed on the (j, k) weight-tile index (NOT the batch index) so every
    # batch tile sees the same sampled weights -> tiling-independent forward.
    # (With tm sized to cover typical VarLayer batches there is a single batch
    #  tile, so the exp + sampling work is not recomputed in practice.)
    pltpu.prng_seed(seed_ref[0], j, k)
    eps_w = pltpu.stateful_normal(mean_ref.shape, jnp.float32)
    w = mean_ref[...] + (MIN_SIGMA + jnp.exp(log_sigma_ref[...])) * eps_w

    acc_ref[...] += jnp.dot(x_ref[...], w, preferred_element_type=jnp.float32)

    @pl.when(k == pl.num_programs(2) - 1)
    def _():
        o_ref[...] = jnp.maximum(acc_ref[...] + b_ref[...], 0.0).astype(o_ref.dtype)


def _varlayer_train_eps_kernel(x_ref, mean_ref, log_sigma_ref, eps_ref, b_ref,
                               o_ref, acc_ref):
    """Training mode fallback: eps_w generated on host and streamed from HBM."""
    k = pl.program_id(2)

    @pl.when(k == 0)
    def _():
        acc_ref[...] = jnp.zeros_like(acc_ref)

    w = mean_ref[...] + (MIN_SIGMA + jnp.exp(log_sigma_ref[...])) * eps_ref[...]
    acc_ref[...] += jnp.dot(x_ref[...], w, preferred_element_type=jnp.float32)

    @pl.when(k == pl.num_programs(2) - 1)
    def _():
        o_ref[...] = jnp.maximum(acc_ref[...] + b_ref[...], 0.0).astype(o_ref.dtype)


# --------------------------------------------------------------------------- #
# Host-side glue
# --------------------------------------------------------------------------- #
def _round_up(x, m):
    return (x + m - 1) // m * m


def _choose_tiles(B, in_, out_):
    # Lane dims 128-aligned (MXU geometry on all gens; 512 is also a 256-multiple
    # for v6e/v7x).  Capped so worst-case double-buffered VMEM stays ~<10 MiB,
    # which fits v5e's 16 MiB scoped default and v7x's 64 MiB physical VMEM.
    tm = min(_round_up(B, 8), 256)
    tn = min(_round_up(out_, 128), 512)
    tk = min(_round_up(in_, 128), 512)
    return tm, tn, tk


def _pad2(a, rows, cols):
    pr, pc = rows - a.shape[0], cols - a.shape[1]
    if pr or pc:
        a = jnp.pad(a, ((0, pr), (0, pc)))
    return a


def var_layer_forward(x, mean, log_sigma, mean_b, log_sigma_b,
                      *, training=False, key=None):
    """Pallas implementation of VarLayer.forward (act = ReLU)."""
    B, in_ = x.shape
    in_w, out_ = mean.shape
    assert in_ == in_w

    tm, tn, tk = _choose_tiles(B, in_, out_)
    B_p = _round_up(B, tm)
    in_p = _round_up(in_, tk)
    out_p = _round_up(out_, tn)
    grid = (B_p // tm, out_p // tn, in_p // tk)

    x_p = _pad2(x.astype(jnp.float32), B_p, in_p)
    mean_p = _pad2(mean.astype(jnp.float32), in_p, out_p)

    # Bias (out_,) is tiny; sample / pass-through in plain-JAX glue.
    if training:
        assert key is not None, "training=True requires a PRNG key"
        k_w, k_b = jax.random.split(key)
        eps_b = jax.random.normal(k_b, (out_,), dtype=jnp.float32)
        b = mean_b + (MIN_SIGMA + jnp.exp(log_sigma_b)) * eps_b
    else:
        b = mean_b
    b_p = _pad2(b.reshape(1, out_).astype(jnp.float32), 1, out_p)

    # Shared specs.  `*_` swallows the scalar-prefetch ref in the training path.
    x_spec = pl.BlockSpec((tm, tk), lambda i, j, k, *_: (i, k))
    w_spec = pl.BlockSpec((tk, tn), lambda i, j, k, *_: (k, j))
    b_spec = pl.BlockSpec((1, tn), lambda i, j, k, *_: (0, j))
    o_spec = pl.BlockSpec((tm, tn), lambda i, j, k, *_: (i, j))
    scratch = [pltpu.VMEM((tm, tn), jnp.float32)]
    out_shape = jax.ShapeDtypeStruct((B_p, out_p), jnp.float32)
    cparams = pltpu.CompilerParams(
        dimension_semantics=("parallel", "parallel", "arbitrary"),
        vmem_limit_bytes=32 * 1024 * 1024)

    def _cost(n_weight_streams, transcendentals):
        return pl.CostEstimate(
            flops=2 * B_p * in_p * out_p,
            transcendentals=transcendentals,
            bytes_accessed=4 * (B_p * in_p + n_weight_streams * in_p * out_p
                                + out_p + B_p * out_p))

    if not training:
        # Eval fast path: do NOT stream log_sigma / eps at all.
        out_pad = pl.pallas_call(
            _varlayer_eval_kernel,
            out_shape=out_shape,
            grid_spec=pltpu.PrefetchScalarGridSpec(
                num_scalar_prefetch=0, grid=grid,
                in_specs=[x_spec, w_spec, b_spec],
                out_specs=o_spec, scratch_shapes=scratch),
            compiler_params=cparams,
            cost_estimate=_cost(1, 0),
        )(x_p, mean_p, b_p)
        return out_pad[:B, :out_]

    log_sigma_p = _pad2(log_sigma.astype(jnp.float32), in_p, out_p)

    if _HAS_INKERNEL_RNG:
        try:
            seed = jax.random.randint(k_w, (1,), 0, 2**31 - 1, dtype=jnp.int32)
            out_pad = pl.pallas_call(
                _varlayer_train_rng_kernel,
                out_shape=out_shape,
                grid_spec=pltpu.PrefetchScalarGridSpec(
                    num_scalar_prefetch=1, grid=grid,
                    in_specs=[x_spec, w_spec, w_spec, b_spec],
                    out_specs=o_spec, scratch_shapes=scratch),
                compiler_params=cparams,
                cost_estimate=_cost(2, in_p * out_p),
            )(seed, x_p, mean_p, log_sigma_p, b_p)
            return jax.block_until_ready(out_pad)[:B, :out_]
        except Exception:
            pass  # fall through to the host-eps kernel below

    # Fallback: stream host-generated eps_w (3 weight-sized streams).
    eps_w = jax.random.normal(k_w, (in_, out_), dtype=jnp.float32)
    eps_p = _pad2(eps_w, in_p, out_p)
    out_pad = pl.pallas_call(
        _varlayer_train_eps_kernel,
        out_shape=out_shape,
        grid_spec=pltpu.PrefetchScalarGridSpec(
            num_scalar_prefetch=0, grid=grid,
            in_specs=[x_spec, w_spec, w_spec, w_spec, b_spec],
            out_specs=o_spec, scratch_shapes=scratch),
        compiler_params=cparams,
        cost_estimate=_cost(3, in_p * out_p),
    )(x_p, mean_p, log_sigma_p, eps_p, b_p)
    return out_pad[:B, :out_]


def init_var_layer_params(key, in_, out_, init_log_sigma=-3.0):
    """Deterministic parameter init mirroring VarLayer.__init__."""
    k_mean, k_meanb = jax.random.split(key)
    bound = math.sqrt(6.0 / (in_ + out_))  # xavier_uniform on (in_, out_)
    mean = jax.random.uniform(k_mean, (in_, out_), jnp.float32, -bound, bound)
    log_sigma = jnp.full((in_, out_), init_log_sigma, dtype=jnp.float32)
    mean_b = jax.random.normal(k_meanb, (out_,), dtype=jnp.float32)
    log_sigma_b = jnp.full((out_,), init_log_sigma, dtype=jnp.float32)
    return mean, log_sigma, mean_b, log_sigma_b


# TODO(synk): KLD() (analytic Normal-Normal KL reduction) is not part of forward(); omitted.


if __name__ == "__main__":
    key = jax.random.PRNGKey(0)
    k_param, k_x, k_sample, k_param2, k_x2 = jax.random.split(key, 5)

    # Small shapes consistent with the module (dense layer).
    B, in_, out_ = 8, 32, 32
    mean, log_sigma, mean_b, log_sigma_b = init_var_layer_params(k_param, in_, out_)
    x = jax.random.normal(k_x, (B, in_), dtype=jnp.float32)

    # --- eval mode: exact check vs plain-JAX reference -----------------------
    out_eval = jax.block_until_ready(
        var_layer_forward(x, mean, log_sigma, mean_b, log_sigma_b, training=False))
    ref = jnp.maximum(
        jnp.dot(x, mean, precision=jax.lax.Precision.HIGHEST) + mean_b, 0.0)
    assert out_eval.shape == (B, out_)
    assert jnp.allclose(out_eval, ref, atol=1e-4, rtol=1e-4), "eval mismatch vs reference"

    # --- training mode: reparameterized sample ------------------------------
    out_train = jax.block_until_ready(
        var_layer_forward(x, mean, log_sigma, mean_b, log_sigma_b,
                          training=True, key=k_sample))
    assert out_train.shape == (B, out_)
    assert bool(jnp.all(jnp.isfinite(out_train)))
    assert bool(jnp.all(out_train >= 0.0))

    # With a near-zero sigma the training sample must collapse onto the eval
    # output -> indirectly validates the reparameterized sampling path.
    tiny = jnp.full_like(log_sigma, -20.0)
    tiny_b = jnp.full_like(log_sigma_b, -20.0)
    out_tiny = jax.block_until_ready(
        var_layer_forward(x, mean, tiny, mean_b, tiny_b, training=True, key=k_sample))
    assert jnp.allclose(out_tiny, out_eval, atol=5e-3, rtol=5e-3), "train(sigma~0) != eval"

    # --- larger shape: exercises multiple K tiles + padding path -------------
    B2, in2, out2 = 16, 640, 256
    mean2, log_sigma2, mean_b2, log_sigma_b2 = init_var_layer_params(k_param2, in2, out2)
    x2 = jax.random.normal(k_x2, (B2, in2), dtype=jnp.float32)
    out2_eval = jax.block_until_ready(
        var_layer_forward(x2, mean2, log_sigma2, mean_b2, log_sigma_b2, training=False))
    ref2 = jnp.maximum(
        jnp.dot(x2, mean2, precision=jax.lax.Precision.HIGHEST) + mean_b2, 0.0)
    assert out2_eval.shape == (B2, out2)
    assert jnp.allclose(out2_eval, ref2, atol=2e-4, rtol=2e-4), "tiled eval mismatch"

    print("KERNEL_OK")
</pallas_src>

<mosaic_0001>
module attributes {stable_mosaic.version = 11 : i64} {
  func.func @_varlayer_eval_kernel(%arg0: i32, %arg1: i32, %arg2: i32, %arg3: memref<8x128xf32, #tpu.memory_space<vmem>>, %arg4: memref<128x128xf32, #tpu.memory_space<vmem>>, %arg5: memref<1x128xf32, #tpu.memory_space<vmem>>, %arg6: memref<8x128xf32, #tpu.memory_space<vmem>>, %arg7: memref<8x128xf32, #tpu.memory_space<vmem>>) attributes {dimension_semantics = [#tpu.dimension_semantics<parallel>, #tpu.dimension_semantics<parallel>, #tpu.dimension_semantics<arbitrary>], iteration_bounds = array<i64: 1, 1, 1>, scalar_prefetch = 0 : i64, scratch_operands = 1 : i64, tpu.core_type = #tpu.core_type<tc>, window_params = [{transform_indices = @transform_0, window_bounds = array<i64: 8, 128>}, {transform_indices = @transform_1, window_bounds = array<i64: 128, 128>}, {transform_indices = @transform_2, window_bounds = array<i64: 1, 128>}, {transform_indices = @transform_3, window_bounds = array<i64: 8, 128>}]} {
    %c0_i32 = arith.constant 0 : i32
    %0 = arith.cmpi eq, %arg2, %c0_i32 : i32
    %1 = arith.extui %0 : i1 to i32
    %c0_i32_0 = arith.constant 0 : i32
    %2 = arith.cmpi ne, %1, %c0_i32_0 : i32
    scf.if %2 {
      %cst_10 = arith.constant 0.000000e+00 : f32
      %12 = vector.broadcast %cst_10 : f32 to vector<8x128xf32>
      %c0_11 = arith.constant 0 : index
      %c0_12 = arith.constant 0 : index
      %13 = vector.load %arg7[%c0_11, %c0_12] : memref<8x128xf32, #tpu.memory_space<vmem>>, vector<8x128xf32>
      tpu.vector_store %arg7[%c0_11, %c0_12], %12 {strides = array<i32>} : memref<8x128xf32, #tpu.memory_space<vmem>>, vector<8x128xf32>,
    } else {
    }
    %c0 = arith.constant 0 : index
    %c0_1 = arith.constant 0 : index
    %3 = vector.load %arg7[%c0, %c0_1] : memref<8x128xf32, #tpu.memory_space<vmem>>, vector<8x128xf32>
    %c0_2 = arith.constant 0 : index
    %c0_3 = arith.constant 0 : index
    %4 = vector.load %arg3[%c0_2, %c0_3] : memref<8x128xf32, #tpu.memory_space<vmem>>, vector<8x128xf32>
    %c0_4 = arith.constant 0 : index
    %c0_5 = arith.constant 0 : index
    %5 = vector.load %arg4[%c0_4, %c0_5] : memref<128x128xf32, #tpu.memory_space<vmem>>, vector<128x128xf32>
    %cst = arith.constant dense<0.000000e+00> : vector<8x128xf32>
    %6 = tpu.matmul %4, %5, %cst {dimension_numbers = #tpu.dot_dimension_numbers<[1], [0], [0], [1], [0, 0, 1, 1], [], []>} : vector<8x128xf32>, vector<128x128xf32>, vector<8x128xf32> -> vector<8x128xf32>
    %7 = arith.addf %3, %6 : vector<8x128xf32>
    %c0_6 = arith.constant 0 : index
    %c0_7 = arith.constant 0 : index
    %8 = vector.load %arg7[%c0_6, %c0_7] : memref<8x128xf32, #tpu.memory_space<vmem>>, vector<8x128xf32>
    tpu.vector_store %arg7[%c0_6, %c0_7], %7 {strides = array<i32>} : memref<8x128xf32, #tpu.memory_space<vmem>>, vector<8x128xf32>,
    %c0_i32_8 = arith.constant 0 : i32
    %9 = arith.cmpi eq, %arg2, %c0_i32_8 : i32
    %10 = arith.extui %9 : i1 to i32
    %c0_i32_9 = arith.constant 0 : i32
    %11 = arith.cmpi ne, %10, %c0_i32_9 : i32
    scf.if %11 {
      %c0_10 = arith.constant 0 : index
      %c0_11 = arith.constant 0 : index
      %12 = vector.load %arg7[%c0_10, %c0_11] : memref<8x128xf32, #tpu.memory_space<vmem>>, vector<8x128xf32>
      %c0_12 = arith.constant 0 : index
      %c0_13 = arith.constant 0 : index
      %13 = vector.load %arg5[%c0_12, %c0_13] : memref<1x128xf32, #tpu.memory_space<vmem>>, vector<1x128xf32>
      %14 = vector.broadcast %13 : vector<1x128xf32> to vector<8x128xf32>
      %15 = arith.addf %12, %14 : vector<8x128xf32>
      %cst_14 = arith.constant 0.000000e+00 : f32
      %16 = vector.broadcast %cst_14 : f32 to vector<8x128xf32>
      %17 = arith.maximumf %15, %16 : vector<8x128xf32>
      %c0_15 = arith.constant 0 : index
      %c0_16 = arith.constant 0 : index
      %18 = vector.load %arg6[%c0_15, %c0_16] : memref<8x128xf32, #tpu.memory_space<vmem>>, vector<8x128xf32>
      tpu.vector_store %arg6[%c0_15, %c0_16], %17 {strides = array<i32>} : memref<8x128xf32, #tpu.memory_space<vmem>>, vector<8x128xf32>,
    } else {
    }
    return
  }
  func.func @transform_0(%arg0: i32, %arg1: i32, %arg2: i32) -> (i32, i32) {
    %c0_i32 = arith.constant 0 : i32
    return %arg0, %arg2 : i32, i32
  }
  func.func @transform_1(%arg0: i32, %arg1: i32, %arg2: i32) -> (i32, i32) {
    %c0_i32 = arith.constant 0 : i32
    return %arg2, %arg1 : i32, i32
  }
  func.func @transform_2(%arg0: i32, %arg1: i32, %arg2: i32) -> (i32, i32) {
    %c0_i32 = arith.constant 0 : i32
    %c0_i32_0 = arith.constant 0 : i32
    return %c0_i32, %arg1 : i32, i32
  }
  func.func @transform_3(%arg0: i32, %arg1: i32, %arg2: i32) -> (i32, i32) {
    %c0_i32 = arith.constant 0 : i32
    return %arg0, %arg1 : i32, i32
  }
}

</mosaic_0001>

<llo_original>
// kernel: tpu_custom_call.1
$region0: #{tpu_custom_call.1}
  #allocation0 [shape = 'u32[]', space=smem, size = 0x4, offset = 0x4, fixed_abs, tag = 'smem constant byte address 0x4 - core index']
  #allocation1 [shape = 'u32[144,128]{1,0:T(1,128)}', space=vmem, size = 0x12000, scoped, tag = 'internal scratch']
  #allocation2 [shape = 'f32[8,128]{1,0:T(8,128)}', space=vmem, size = 0x1000, scoped, tag = 'scratch operand']
  %s0 = inlined_call_operand.hbm [shape: f32[8,128], index: 0, kind: input, shape index: {}]
  %s1 = inlined_call_operand.hbm [shape: f32[128,128], index: 1, kind: input, shape index: {}]
  %s2 = inlined_call_operand.vmem [shape: f32[1,128], index: 2, kind: input, shape index: {}]
  %s3 = inlined_call_operand.hbm [shape: f32[8,128], index: 3, kind: output, shape index: {}]
  %s4 = sld [smem:[#allocation0]]
  $region38: #{tpu_custom_call.1} parent=0
    _
  %s6 = ssub.s32 1, %s4
  %s7 = scalar_select 0, %s6, %s4
  $region1: #{tpu_custom_call.1} parent=0
    #allocation3 [shape = 'u8[4096]{0}', space=vmem, size = 0x1000, scoped, tag = 'input window, operand 0, single buffered']
    #allocation4 [shape = 's32[1]{0}', space=sflag, size = 0x4, scoped, tag = 'scoped memory for tpu_custom_call.1']
    #allocation5 [shape = 's32[1]{0}', space=sflag, size = 0x4, scoped, tag = 'scoped memory for tpu_custom_call.1']
    #allocation6 [shape = 'u8[65536]{0}', space=vmem, size = 0x10000, scoped, tag = 'input window, operand 1, single buffered']
    #allocation7 [shape = 's32[1]{0}', space=sflag, size = 0x4, scoped, tag = 'scoped memory for tpu_custom_call.1']
    #allocation8 [shape = 'u8[4096]{0}', space=vmem, size = 0x1000, scoped, tag = 'output window, operand 0, single buffered']
    %8 = vsyncpa [#allocation4], 0
    %9 = vsyncpa [#allocation7], 0
    %10 = vsyncpa [#allocation5], 0
    // Predicated region
    $region2: #{tpu_custom_call.1} parent=1 // pred_check
      _
    $region3: #{tpu_custom_call.1} parent=1 // pred_check_branch
      %12 = sbr.rel (0) target = $region5
    $region4: #{tpu_custom_call.1} parent=1 // pred_region
      %s14 = ssub.s32 128, 128
      %15 = vsyncadd [#allocation4], %s14
      %s17 = sshll.u32 [#allocation3], 4
      %s18 = int_to_ptr.vmem [resolvable:$true] %s17
      %20 = dma.hbm_to_vmem [thread:$0]  %s0, 128, %s18, [#allocation4]
    $region5: #{tpu_custom_call.1} parent=1 // pred_fallthru
      _
    // Predicated region
    $region6: #{tpu_custom_call.1} parent=1 // pred_check
      _
    $region7: #{tpu_custom_call.1} parent=1 // pred_check_branch
      %22 = sbr.rel (0) target = $region9
    $region8: #{tpu_custom_call.1} parent=1 // pred_region
      %s24 = ssub.s32 2048, 2048
      %25 = vsyncadd [#allocation7], %s24
      %s26 = sshll.u32 [#allocation6], 4
      %s27 = int_to_ptr.vmem [resolvable:$true] %s26
      %32 = dma.hbm_to_vmem [thread:$0]  %s1, 2048, %s27, [#allocation7], 128, 128, 8
    $region9: #{tpu_custom_call.1} parent=1 // pred_fallthru
      _
    // Predicated region
    $region10: #{tpu_custom_call.1} parent=1 // pred_check
      _
    $region11: #{tpu_custom_call.1} parent=1 // pred_check_branch
      %34 = sbr.rel (0) target = $region13
    $region12: #{tpu_custom_call.1} parent=1 // pred_region
      _
    $region13: #{tpu_custom_call.1} parent=1 // pred_fallthru
      _
    // Predicated region
    $region14: #{tpu_custom_call.1} parent=1 // pred_check
      _
    $region15: #{tpu_custom_call.1} parent=1 // pred_check_branch
      %36 = sbr.rel (0) target = $region17
    $region16: #{tpu_custom_call.1} parent=1 // pred_region
      %37 = dma.done [#allocation4], 128
    $region17: #{tpu_custom_call.1} parent=1 // pred_fallthru
      _
    // Predicated region
    $region18: #{tpu_custom_call.1} parent=1 // pred_check
      _
    $region19: #{tpu_custom_call.1} parent=1 // pred_check_branch
      %39 = sbr.rel (0) target = $region21
    $region20: #{tpu_custom_call.1} parent=1 // pred_region
      %40 = dma.done [#allocation7], 2048
    $region21: #{tpu_custom_call.1} parent=1 // pred_fallthru
      _
    %p41 = scmp.eq.s32.totalorder 0, 0
    // Predicated region
    $region22: #{tpu_custom_call.1} parent=1 // pred_check
      %p42 = pneg %p41
    $region23: #{tpu_custom_call.1} parent=1 // pred_check_branch
      %44 = sbr.rel (%p42) target = $region25
    $region24: #{tpu_custom_call.1} parent=1 // pred_region
      %45 = vst [vmem:[#allocation2] sm:$0xff] 0.0
    $region25: #{tpu_custom_call.1} parent=1 // pred_fallthru
      _
    %v46 = vld [vmem:[#allocation2] sm:$0xff]
    %v47 = vld [vmem:[#allocation3] sm:$0xff]
    %v48 = vld [vmem:[#allocation6] sm:$0xff]
    %v49 = vld [vmem:[#allocation6 + $0x8] sm:$0xff]
    %v50 = vld [vmem:[#allocation6 + $0x10] sm:$0xff]
    %v51 = vld [vmem:[#allocation6 + $0x18] sm:$0xff]
    %v52 = vld [vmem:[#allocation6 + $0x20] sm:$0xff]
    %v53 = vld [vmem:[#allocation6 + $0x28] sm:$0xff]
    %v54 = vld [vmem:[#allocation6 + $0x30] sm:$0xff]
    %v55 = vld [vmem:[#allocation6 + $0x38] sm:$0xff]
    %v56 = vld [vmem:[#allocation6 + $0x40] sm:$0xff]
    %v57 = vld [vmem:[#allocation6 + $0x48] sm:$0xff]
    %v58 = vld [vmem:[#allocation6 + $0x50] sm:$0xff]
    %v59 = vld [vmem:[#allocation6 + $0x58] sm:$0xff]
    %v60 = vld [vmem:[#allocation6 + $0x60] sm:$0xff]
    %v61 = vld [vmem:[#allocation6 + $0x68] sm:$0xff]
    %v62 = vld [vmem:[#allocation6 + $0x70] sm:$0xff]
    %v63 = vld [vmem:[#allocation6 + $0x78] sm:$0xff]
    %64 = vmatprep.subr.mxu0 0.0
    %65 = vmatpush1.msra.mxu0 %v63
    %66 = vmatprep.subr.mxu0 0.0
    %67 = vmatpush1.msra.mxu0 %v62
    %68 = vmatprep.subr.mxu0 0.0
    %69 = vmatpush1.msra.mxu0 %v61
    %70 = vmatprep.subr.mxu0 0.0
    %71 = vmatpush1.msra.mxu0 %v60
    %72 = vmatprep.subr.mxu0 0.0
    %73 = vmatpush1.msra.mxu0 %v59
    %74 = vmatprep.subr.mxu0 0.0
    %75 = vmatpush1.msra.mxu0 %v58
    %76 = vmatprep.subr.mxu0 0.0
    %77 = vmatpush1.msra.mxu0 %v57
    %78 = vmatprep.subr.mxu0 0.0
    %79 = vmatpush1.msra.mxu0 %v56
    %80 = vmatprep.subr.mxu0 0.0
    %81 = vmatpush1.msra.mxu0 %v55
    %82 = vmatprep.subr.mxu0 0.0
    %83 = vmatpush1.msra.mxu0 %v54
    %84 = vmatprep.subr.mxu0 0.0
    %85 = vmatpush1.msra.mxu0 %v53
    %86 = vmatprep.subr.mxu0 0.0
    %87 = vmatpush1.msra.mxu0 %v52
    %88 = vmatprep.subr.mxu0 0.0
    %89 = vmatpush1.msra.mxu0 %v51
    %90 = vmatprep.subr.mxu0 0.0
    %91 = vmatpush1.msra.mxu0 %v50
    %92 = vmatprep.subr.mxu0 0.0
    %93 = vmatpush1.msra.mxu0 %v49
    %94 = vmatprep.subr.mxu0 0.0
    %95 = vmatpush1.msra.mxu0 %v48
    %96 = vmatprep.subr.mxu0 0.0
    %97 = vmatpush2.msra.mxu0 0.0
    %98 = vmatprep.subr.mxu0 0.0
    %99 = vmatpush2.msra.mxu0 0.0
    %100 = vmatprep.subr.mxu0 0.0
    %101 = vmatpush2.msra.mxu0 0.0
    %102 = vmatprep.subr.mxu0 0.0
    %103 = vmatpush2.msra.mxu0 0.0
    %104 = vmatprep.subr.mxu0 0.0
    %105 = vmatpush2.msra.mxu0 0.0
    %106 = vmatprep.subr.mxu0 0.0
    %107 = vmatpush2.msra.mxu0 0.0
    %108 = vmatprep.subr.mxu0 0.0
    %109 = vmatpush2.msra.mxu0 0.0
    %110 = vmatprep.subr.mxu0 0.0
    %111 = vmatpush2.msra.mxu0 0.0
    %112 = vmatprep.subr.mxu0 0.0
    %113 = vmatpush2.msra.mxu0 0.0
    %114 = vmatprep.subr.mxu0 0.0
    %115 = vmatpush2.msra.mxu0 0.0
    %116 = vmatprep.subr.mxu0 0.0
    %117 = vmatpush2.msra.mxu0 0.0
    %118 = vmatprep.subr.mxu0 0.0
    %119 = vmatpush2.msra.mxu0 0.0
    %120 = vmatprep.subr.mxu0 0.0
    %121 = vmatpush2.msra.mxu0 0.0
    %122 = vmatprep.subr.mxu0 0.0
    %123 = vmatpush2.msra.mxu0 0.0
    %124 = vmatprep.subr.mxu0 0.0
    %125 = vmatpush2.msra.mxu0 0.0
    %126 = vmatprep.subr.mxu0 0.0
    %127 = vmatpush2.msra.mxu0 0.0
    %128 = vmatprep.mubr.f32.mxu0 0.0
    %129 = vmatmul.mubr.f32.gmra.mxu0 %v47
    %v130 = vpop.f32.mrf.mxu0
    %v131 = vadd.f32 0.0, %v130
    %v132 = vpop.f32.mrf.mxu0
    %133 = vdwg.mxu0
    %v134 = vadd.f32 %v46, %v131
    %135 = vst [vmem:[#allocation2] sm:$0xff] %v134
    // Predicated region
    $region26: #{tpu_custom_call.1} parent=1 // pred_check
      %p136 = pneg %p41
    $region27: #{tpu_custom_call.1} parent=1 // pred_check_branch
      %138 = sbr.rel (%p136) target = $region29
    $region28: #{tpu_custom_call.1} parent=1 // pred_region
      %v139 = vld [vmem:[#allocation2] sm:$0xff]
      %v140 = vld [vmem:[%s2] sm:$0x1]
      %v142 = vlaneseq
      %v143 = vshrl.u32 %v142, 7
      %v144 = vsub.s32 0, %v143
      %v145 = vrot.slane %v140, %v144
      %v147 = vadd.f32 %v139, %v145
      %v148 = vmax.f32 %v147, 0.0
      %149 = vst [vmem:[#allocation8] sm:$0xff] %v148
    $region29: #{tpu_custom_call.1} parent=1 // pred_fallthru
      _
    // Predicated region
    $region30: #{tpu_custom_call.1} parent=1 // pred_check
      _
    $region31: #{tpu_custom_call.1} parent=1 // pred_check_branch
      %151 = sbr.rel (0) target = $region33
    $region32: #{tpu_custom_call.1} parent=1 // pred_region
      %s153 = ssub.s32 128, 128
      %154 = vsyncadd [#allocation5], %s153
      %s156 = sshll.u32 [#allocation8], 4
      %s157 = int_to_ptr.vmem [resolvable:$true] %s156
      %159 = dma.vmem_to_hbm [thread:$0]  %s157, 128, %s3, [#allocation5]
    $region33: #{tpu_custom_call.1} parent=1 // pred_fallthru
      _
    // Predicated region
    $region34: #{tpu_custom_call.1} parent=1 // pred_check
      _
    $region35: #{tpu_custom_call.1} parent=1 // pred_check_branch
      %161 = sbr.rel (0) target = $region37
    $region36: #{tpu_custom_call.1} parent=1 // pred_region
      %162 = dma.done [#allocation5], 128
    $region37: #{tpu_custom_call.1} parent=1 // pred_fallthru
      _
    %163 = vsyncpa [#allocation4], 1
    %164 = vsyncpa [#allocation7], 1
    %165 = vsyncpa [#allocation5], 1

</llo_original>
